<compile_context>
chip_gen: v6e
topology: v6e:2x2x1
jax: 0.10.0
libtpu: 0.0.40
codegen_flags: <defaults>
</compile_context>

<pallas_src>
import random

import jax
import jax.numpy as jnp
from jax.experimental import pallas as pl
from jax.experimental.pallas import tpu as pltpu

# ---- module hyper-parameters -------------------------------------------------
N_FEATS  = 4
N_HIDDEN = 16
N_WINDOW = 5
N_MASK   = int(N_WINDOW * 0.4)            # = 2
N_SEL    = N_FEATS * N_MASK               # = 8   (module's self.n)
N_REM    = N_FEATS * (N_WINDOW - N_MASK)  # = 12
FULL_N   = N_FEATS * N_WINDOW             # = 20  (module's self.full_n)

N_OUT    = FULL_N + 2                     # 20 z2 lanes + real + fake = 22
K_PAD    = 24                             # input lanes: 20 data + 1 const-one + 3 pad
_LANES   = 128                            # lane-dense weight / output width
_OUT_ROWS = 8                             # output = exactly one (8,128) f32 tile


# ---- the kernel: one matmul, lane-masked sigmoid, one full-tile store ----------
def _mygan_kernel(x_ref, w_ref, out_ref):
    # x: (1, 24)  lanes 0..19 = flattened window, lane 20 = 1.0 (bias lane)
    # w: (24, 128) rows 0..19 = collapsed weight, row 20 = collapsed bias
    y = jnp.dot(x_ref[...], w_ref[...], preferred_element_type=jnp.float32)  # (1, 128)

    lane = jax.lax.broadcasted_iota(jnp.int32, (1, _LANES), 1)
    is_score = (lane >= FULL_N) & (lane < FULL_N + 2)        # lanes 20 (real), 21 (fake)
    y = jnp.where(is_score, jax.nn.sigmoid(y), y)

    row = jax.lax.broadcasted_iota(jnp.int32, (_OUT_ROWS, _LANES), 0)
    out_ref[...] = jnp.where(row == 0, y, 0.0)               # one unmasked (8,128) store


# ---- host-side parameter init --------------------------------------------------
def init_params(key):
    """Deterministic init; Linear weights stored as (in, out), biases as (1, out)."""
    ks = jax.random.split(key, 6)

    def lin(k, fan_in, fan_out):
        kw, kb = jax.random.split(k)
        bound = 1.0 / jnp.sqrt(jnp.float32(fan_in))
        w = jax.random.uniform(kw, (fan_in, fan_out), jnp.float32, -bound, bound)
        b = jax.random.uniform(kb, (1, fan_out), jnp.float32, -bound, bound)
        return w, b

    return {
        "rth": lin(ks[0], N_SEL, N_HIDDEN),
        "g1":  lin(ks[1], N_HIDDEN, N_HIDDEN),
        "g2":  lin(ks[2], N_HIDDEN, N_SEL),
        "d1":  lin(ks[3], FULL_N, N_HIDDEN),
        "d2":  lin(ks[4], N_HIDDEN, N_HIDDEN),
        "d3":  lin(ks[5], N_HIDDEN, 1),
    }


def _mask_indices(mask_seed):
    # TODO(synk): python random.sample window masking stays host-side (matches the
    # original module's per-forward RNG); it is folded into the packed weights.
    rng = random.Random(mask_seed)
    select_windows = sorted(rng.sample(range(N_WINDOW), N_MASK))
    remain_windows = [v for v in range(N_WINDOW) if v not in select_windows]
    selected_idx = [j + i * N_FEATS for i in select_windows for j in range(N_FEATS)]
    remain_idx = [j + i * N_FEATS for i in remain_windows for j in range(N_FEATS)]
    return selected_idx, remain_idx


# ---- pack: collapse the whole affine network into one (24,128) slab ------------
def pack_params(params, mask_seed=0):
    """Fold the (compile-time constant) window mask AND every affine layer into a
    single (K_PAD, 128) weight slab.  Call once per (params, mask); reuse."""
    selected_idx, remain_idx = _mask_indices(mask_seed)
    sel_i = jnp.array(selected_idx)
    rem_i = jnp.array(remain_idx)
    perm_i = jnp.array(selected_idx + remain_idx)
    f32 = jnp.float32

    w_rth, b_rth = params["rth"]
    w_g1,  b_g1  = params["g1"]
    w_g2,  b_g2  = params["g2"]
    w_d1,  b_d1  = params["d1"]
    w_d2,  b_d2  = params["d2"]
    w_d3,  b_d3  = params["d3"]

    # sel @ w_rth == ori @ w_rth_ori  (exact row scatter of the selected indices)
    w_rth_ori = jnp.zeros((FULL_N, N_HIDDEN), f32).at[sel_i].set(w_rth)

    # Generator collapse (LeakyReLU(True) == slope 1.0 == identity).
    w_gen_z = w_rth_ori @ w_g1 @ w_g2                              # (20, 8)
    b_gen_z = (b_rth @ w_g1 + b_g1) @ w_g2 + b_g2                  # (1, 8)

    # remain gather as a 0/1 matmul: rem = ori @ p_rem
    p_rem = jnp.zeros((FULL_N, N_REM), f32).at[rem_i, jnp.arange(N_REM)].set(1.0)

    w_gen = jnp.concatenate([w_gen_z, p_rem], axis=1)              # (20,20): z2 = ori@w_gen + b_gen
    b_gen = jnp.concatenate([b_gen_z, jnp.zeros((1, N_REM), f32)], axis=1)

    # Discriminator collapse: d1 -> d2 -> d3 (pre-sigmoid).
    w_d = w_d1 @ w_d2 @ w_d3                                       # (20, 1)
    b_d = (b_d1 @ w_d2 + b_d2) @ w_d3 + b_d3                       # (1, 1)

    # real path: g2 = cat([sel, rem]) = ori permuted -> fold the permutation into w_d.
    w_real = jnp.zeros((FULL_N, 1), f32).at[perm_i].set(w_d)       # g2 @ w_d == ori @ w_real
    # fake path: z2 @ w_d = ori @ (w_gen @ w_d) + (b_gen @ w_d)
    w_fake = w_gen @ w_d                                           # (20, 1)
    b_fake = b_gen @ w_d + b_d                                     # (1, 1)

    w_all = jnp.concatenate([w_gen, w_real, w_fake], axis=1)       # (20, 22)
    b_all = jnp.concatenate([b_gen, b_d, b_fake], axis=1)          # (1, 22)

    slab = jnp.zeros((K_PAD, _LANES), f32)
    slab = slab.at[:FULL_N, :N_OUT].set(w_all)
    slab = slab.at[FULL_N, :N_OUT].set(b_all[0])   # bias row pairs with the constant-1 input lane
    return slab


_slab_cache = {}


def get_packed_slab(params, mask_seed=0):
    """Memoize the packed slab per (params object, mask_seed); assumes params
    are not mutated in place."""
    key = (id(params), mask_seed)
    if key not in _slab_cache:
        _slab_cache[key] = pack_params(params, mask_seed)
    return _slab_cache[key]


# ---- forward ------------------------------------------------------------------
@jax.jit
def _forward_packed(g, slab):
    ori = g.reshape(1, FULL_N).astype(jnp.float32)
    x = jnp.zeros((1, K_PAD), jnp.float32)
    x = x.at[:, :FULL_N].set(ori)
    x = x.at[:, FULL_N].set(1.0)                   # constant-1 bias lane

    out = pl.pallas_call(
        _mygan_kernel,
        out_shape=jax.ShapeDtypeStruct((_OUT_ROWS, _LANES), jnp.float32),
        in_specs=[pl.BlockSpec(memory_space=pltpu.MemorySpace.VMEM),
                  pl.BlockSpec(memory_space=pltpu.MemorySpace.VMEM)],
        out_specs=pl.BlockSpec(memory_space=pltpu.MemorySpace.VMEM),
    )(x, slab)

    z_r    = out[0, 0:FULL_N]                      # z2.view(-1)
    real_r = out[0, FULL_N:FULL_N + 1]             # (1,)
    fake_r = out[0, FULL_N + 1:FULL_N + 2]         # (1,)
    return z_r, real_r, fake_r


def mygan_forward(g, params, mask_seed=0):
    return _forward_packed(g, get_packed_slab(params, mask_seed))


# ---- pure-JAX reference (mirrors the PyTorch module) ----------------------------
def _reference_forward(g, params, mask_seed=0):
    selected_idx, remain_idx = _mask_indices(mask_seed)
    ori = g.reshape(1, -1).astype(jnp.float32)
    sel = ori[:, jnp.array(selected_idx)]
    rem = ori[:, jnp.array(remain_idx)]
    w_rth, b_rth = params["rth"]
    w_g1, b_g1 = params["g1"]
    w_g2, b_g2 = params["g2"]
    w_d1, b_d1 = params["d1"]
    w_d2, b_d2 = params["d2"]
    w_d3, b_d3 = params["d3"]
    h = sel @ w_rth + b_rth                        # LeakyReLU(True) == identity
    z = (h @ w_g1 + b_g1) @ w_g2 + b_g2
    z2 = jnp.concatenate([z, rem], axis=1)
    g2 = jnp.concatenate([sel, rem], axis=1)

    def disc(x):
        d1 = x @ w_d1 + b_d1
        d2 = d1 @ w_d2 + b_d2
        return jax.nn.sigmoid(d2 @ w_d3 + b_d3)

    return z2.reshape(-1), disc(g2).reshape(-1), disc(z2).reshape(-1)


if __name__ == "__main__":
    key = jax.random.PRNGKey(0)
    k_params, k_g = jax.random.split(key)
    params = init_params(k_params)
    g = jax.random.normal(k_g, (N_WINDOW, N_FEATS), jnp.float32)

    slab = get_packed_slab(params, mask_seed=0)    # packed + cached once per mask
    z_r, real_r, fake_r = _forward_packed(g, slab)
    (z_r, real_r, fake_r) = jax.block_until_ready((z_r, real_r, fake_r))

    assert z_r.shape == (FULL_N,), z_r.shape
    assert real_r.shape == (1,), real_r.shape
    assert fake_r.shape == (1,), fake_r.shape
    assert jnp.all((real_r >= 0) & (real_r <= 1)) and jnp.all((fake_r >= 0) & (fake_r <= 1))

    z_ref, real_ref, fake_ref = _reference_forward(g, params, mask_seed=0)
    assert jnp.allclose(z_r, z_ref, atol=2e-2, rtol=2e-2)
    assert jnp.allclose(real_r, real_ref, atol=2e-2, rtol=2e-2)
    assert jnp.allclose(fake_r, fake_ref, atol=2e-2, rtol=2e-2)

    print("KERNEL_OK")
</pallas_src>

<mosaic_0001>
module attributes {stable_mosaic.version = 11 : i64} {
  func.func @_mygan_kernel(%arg0: memref<1x24xf32, #tpu.memory_space<vmem>>, %arg1: memref<24x128xf32, #tpu.memory_space<vmem>>, %arg2: memref<8x128xf32, #tpu.memory_space<vmem>>) attributes {dimension_semantics = [], scalar_prefetch = 0 : i64, scratch_operands = 0 : i64, tpu.core_type = #tpu.core_type<tc>} {
    %c0 = arith.constant 0 : index
    %c0_0 = arith.constant 0 : index
    %0 = vector.load %arg0[%c0, %c0_0] : memref<1x24xf32, #tpu.memory_space<vmem>>, vector<1x24xf32>
    %c0_1 = arith.constant 0 : index
    %c0_2 = arith.constant 0 : index
    %1 = vector.load %arg1[%c0_1, %c0_2] : memref<24x128xf32, #tpu.memory_space<vmem>>, vector<24x128xf32>
    %cst = arith.constant dense<0.000000e+00> : vector<1x128xf32>
    %2 = tpu.matmul %0, %1, %cst {dimension_numbers = #tpu.dot_dimension_numbers<[1], [0], [0], [1], [0, 0, 1, 1], [], []>} : vector<1x24xf32>, vector<24x128xf32>, vector<1x128xf32> -> vector<1x128xf32>
    %3 = tpu.iota {dimensions = array<i32: 1>} : vector<1x128xi32>
    %c20_i32 = arith.constant 20 : i32
    %4 = vector.broadcast %c20_i32 : i32 to vector<1x128xi32>
    %5 = arith.cmpi sge, %3, %4 : vector<1x128xi32>
    %c22_i32 = arith.constant 22 : i32
    %6 = vector.broadcast %c22_i32 : i32 to vector<1x128xi32>
    %7 = arith.cmpi slt, %3, %6 : vector<1x128xi32>
    %8 = arith.andi %5, %7 : vector<1x128xi1>
    %9 = arith.negf %2 : vector<1x128xf32>
    %10 = math.exp %9 : vector<1x128xf32>
    %cst_3 = arith.constant 1.000000e+00 : f32
    %11 = vector.broadcast %cst_3 : f32 to vector<1x128xf32>
    %12 = arith.addf %11, %10 : vector<1x128xf32>
    %13 = arith.divf %11, %12 : vector<1x128xf32>
    %14 = arith.select %8, %13, %2 : vector<1x128xi1>, vector<1x128xf32>
    %15 = tpu.iota {dimensions = array<i32: 0>} : vector<8x128xi32>
    %c0_i32 = arith.constant 0 : i32
    %16 = vector.broadcast %c0_i32 : i32 to vector<8x128xi32>
    %17 = arith.cmpi eq, %15, %16 : vector<8x128xi32>
    %cst_4 = arith.constant 0.000000e+00 : f32
    %18 = vector.shape_cast %14 : vector<1x128xf32> to vector<1x128xf32>
    %19 = vector.broadcast %18 : vector<1x128xf32> to vector<8x128xf32>
    %20 = vector.broadcast %cst_4 : f32 to vector<8x128xf32>
    %21 = arith.select %17, %19, %20 : vector<8x128xi1>, vector<8x128xf32>
    %c0_5 = arith.constant 0 : index
    %c0_6 = arith.constant 0 : index
    %22 = vector.load %arg2[%c0_5, %c0_6] : memref<8x128xf32, #tpu.memory_space<vmem>>, vector<8x128xf32>
    tpu.vector_store %arg2[%c0_5, %c0_6], %21 {strides = array<i32>} : memref<8x128xf32, #tpu.memory_space<vmem>>, vector<8x128xf32>,
    return
  }
}

</mosaic_0001>

<llo_original>
// kernel: _forward_packed.1
$region0: #{_forward_packed.1}
  #allocation0 [shape = 'u32[]', space=smem, size = 0x4, offset = 0x4, fixed_abs, tag = 'smem constant byte address 0x4 - core index']
  #allocation1 [shape = 'u32[144,128]{1,0:T(1,128)}', space=vmem, size = 0x12000, scoped, tag = 'internal scratch']
  %s0 = inlined_call_operand.vmem [shape: f32[1,24], index: 0, kind: input, shape index: {}]
  %s1 = inlined_call_operand.vmem [shape: f32[24,128], index: 1, kind: input, shape index: {}]
  %s2 = inlined_call_operand.vmem [shape: f32[8,128], index: 2, kind: output, shape index: {}]
  %s3 = sld [smem:[#allocation0]]
  $region18: #{_forward_packed.1} parent=0
    _
  %s5 = ssub.s32 1, %s3
  %s6 = scalar_select 0, %s5, %s3
  // Predicated region
  $region2: #{_forward_packed.1} parent=0 // pred_check
    _
  $region3: #{_forward_packed.1} parent=0 // pred_check_branch
    %8 = sbr.rel (0) target = $region5
  $region4: #{_forward_packed.1} parent=0 // pred_region
    _
  $region5: #{_forward_packed.1} parent=0 // pred_fallthru
    _
  // Predicated region
  $region6: #{_forward_packed.1} parent=0 // pred_check
    _
  $region7: #{_forward_packed.1} parent=0 // pred_check_branch
    %10 = sbr.rel (0) target = $region9
  $region8: #{_forward_packed.1} parent=0 // pred_region
    _
  $region9: #{_forward_packed.1} parent=0 // pred_fallthru
    _
  %v11 = vld [vmem:[%s0] sm:$0x1]
  %v12 = vld [vmem:[%s1] sm:$0xff]
  %v13 = vld [vmem:[%s1 + $0x8] sm:$0xff]
  %v14 = vld [vmem:[%s1 + $0x10] sm:$0xff]
  %vm15 = vcmask 195584
  %v17 = vsel %vm15, %v11, 0
  %19 = vmatprep.subr.mxu0 0.0
  %20 = vmatpush1.msra.mxu0 0.0
  %21 = vmatprep.subr.mxu0 0.0
  %22 = vmatpush1.msra.mxu0 0.0
  %23 = vmatprep.subr.mxu0 0.0
  %24 = vmatpush1.msra.mxu0 0.0
  %25 = vmatprep.subr.mxu0 0.0
  %26 = vmatpush1.msra.mxu0 0.0
  %27 = vmatprep.subr.mxu0 0.0
  %28 = vmatpush1.msra.mxu0 0.0
  %29 = vmatprep.subr.mxu0 0.0
  %30 = vmatpush1.msra.mxu0 0.0
  %31 = vmatprep.subr.mxu0 0.0
  %32 = vmatpush1.msra.mxu0 0.0
  %33 = vmatprep.subr.mxu0 0.0
  %34 = vmatpush1.msra.mxu0 0.0
  %35 = vmatprep.subr.mxu0 0.0
  %36 = vmatpush1.msra.mxu0 0.0
  %37 = vmatprep.subr.mxu0 0.0
  %38 = vmatpush1.msra.mxu0 0.0
  %39 = vmatprep.subr.mxu0 0.0
  %40 = vmatpush1.msra.mxu0 0.0
  %41 = vmatprep.subr.mxu0 0.0
  %42 = vmatpush1.msra.mxu0 0.0
  %43 = vmatprep.subr.mxu0 0.0
  %44 = vmatpush1.msra.mxu0 0.0
  %45 = vmatprep.subr.mxu0 0.0
  %46 = vmatpush1.msra.mxu0 %v14
  %47 = vmatprep.subr.mxu0 0.0
  %48 = vmatpush1.msra.mxu0 %v13
  %49 = vmatprep.subr.mxu0 0.0
  %50 = vmatpush1.msra.mxu0 %v12
  %51 = vmatprep.subr.mxu0 0.0
  %52 = vmatpush2.msra.mxu0 0.0
  %53 = vmatprep.subr.mxu0 0.0
  %54 = vmatpush2.msra.mxu0 0.0
  %55 = vmatprep.subr.mxu0 0.0
  %56 = vmatpush2.msra.mxu0 0.0
  %57 = vmatprep.subr.mxu0 0.0
  %58 = vmatpush2.msra.mxu0 0.0
  %59 = vmatprep.subr.mxu0 0.0
  %60 = vmatpush2.msra.mxu0 0.0
  %61 = vmatprep.subr.mxu0 0.0
  %62 = vmatpush2.msra.mxu0 0.0
  %63 = vmatprep.subr.mxu0 0.0
  %64 = vmatpush2.msra.mxu0 0.0
  %65 = vmatprep.subr.mxu0 0.0
  %66 = vmatpush2.msra.mxu0 0.0
  %67 = vmatprep.subr.mxu0 0.0
  %68 = vmatpush2.msra.mxu0 0.0
  %69 = vmatprep.subr.mxu0 0.0
  %70 = vmatpush2.msra.mxu0 0.0
  %71 = vmatprep.subr.mxu0 0.0
  %72 = vmatpush2.msra.mxu0 0.0
  %73 = vmatprep.subr.mxu0 0.0
  %74 = vmatpush2.msra.mxu0 0.0
  %75 = vmatprep.subr.mxu0 0.0
  %76 = vmatpush2.msra.mxu0 0.0
  %77 = vmatprep.subr.mxu0 0.0
  %78 = vmatpush2.msra.mxu0 0.0
  %79 = vmatprep.subr.mxu0 0.0
  %80 = vmatpush2.msra.mxu0 0.0
  %81 = vmatprep.subr.mxu0 0.0
  %82 = vmatpush2.msra.mxu0 0.0
  %83 = vmatprep.mubr.f32.mxu0 0.0
  %84 = vmatmul.mubr.f32.gmra.mxu0 %v17
  %v85 = vpop.f32.mrf.mxu0
  %v86 = vadd.f32 0.0, %v85
  %v87 = vpop.f32.mrf.mxu0
  %88 = vdwg.mxu0
  %v89 = vlaneseq
  %v90 = vand.u32 %v89, 127
  %vm91 = vcmp.ge.s32.totalorder %v90, 20
  %vm92 = vcmp.lt.s32.totalorder %v90, 22
  %vm93 = vmand %vm91, %vm92
  %v94 = vxor.u32 %v86, 2147483648
  %v95 = vmul.f32 %v94, 1.442695
  %v96 = vpow.pop %v95
  %v97 = vadd.f32 %v96, 1.0
  %v98 = vrcp.pop %v97
  %v99 = vmul.f32 1.0, %v98
  %v100 = vsel %vm93, %v99, %v86
  %v101 = vlaneseq
  %v102 = vshrl.u32 %v101, 7
  %vm103 = vcmp.eq.s32.totalorder %v102, 0
  %v104 = vlaneseq
  %v105 = vshrl.u32 %v104, 7
  %v106 = vsub.s32 0, %v105
  %v107 = vrot.slane %v100, %v106
  %v108 = vsel %vm103, %v107, 0.0
  %109 = vst [vmem:[%s2] sm:$0xff] %v108
  // Predicated region
  $region10: #{_forward_packed.1} parent=0 // pred_check
    _
  $region11: #{_forward_packed.1} parent=0 // pred_check_branch
    %111 = sbr.rel (0) target = $region13
  $region12: #{_forward_packed.1} parent=0 // pred_region
    _
  $region13: #{_forward_packed.1} parent=0 // pred_fallthru
    _
  // Predicated region
  $region14: #{_forward_packed.1} parent=0 // pred_check
    _
  $region15: #{_forward_packed.1} parent=0 // pred_check_branch
    %113 = sbr.rel (0) target = $region17
  $region16: #{_forward_packed.1} parent=0 // pred_region
    _
  $region17: #{_forward_packed.1} parent=0 // pred_fallthru
    _

</llo_original>
